<compile_context>
chip_gen: v7x
topology: tpu7x:2x2x1
jax: 0.10.0
libtpu: 0.0.40
codegen_flags: <defaults>
</compile_context>

<pallas_src>
import math

import jax
import jax.numpy as jnp
import numpy as np
from jax.experimental import pallas as pl
from jax.experimental.pallas import tpu as pltpu

_NEG_LARGE = -1e30
_MASK_DIST = 1e30      # "distance" assigned to padded N rows -> exp() == 0


def _round_up(x, m):
    return ((x + m - 1) // m) * m


# --------------------------------------------------------------------------
# Kernel 1: data['z'] = tanh(z), plus per-row ||tanh(z)||^2 for the lse kernel.
# --------------------------------------------------------------------------
def _tanh_kernel(z_ref, mean_ref, a2_ref):
    m = jnp.tanh(z_ref[...].astype(jnp.float32))
    mean_ref[...] = m.astype(mean_ref.dtype)
    a2_ref[...] = jnp.sum(m * m, axis=1, keepdims=True)


# --------------------------------------------------------------------------
# Kernel 2: per-column online logsumexp over N of
#   s_ij = A_aug_i . B_aug_j = (alpha/T) * ||tanh(z)_i - e_j||^2    (<= 0)
# The +||a||^2, +||e||^2 and *alpha/T are all baked into the augmented K
# columns, so the only full-block work here is the MXU dot, the exp and the
# online max/sum update.
# --------------------------------------------------------------------------
def _lse_kernel(a_ref, b_ref, lse_ref, m_scr, l_scr):
    ni = pl.program_id(1)

    @pl.when(ni == 0)
    def _():
        m_scr[...] = jnp.full_like(m_scr, _NEG_LARGE)
        l_scr[...] = jnp.zeros_like(l_scr)

    # (n_tile, D+2) x (m_tile, D+2)^T on the MXU, f32 accumulate.
    s = jax.lax.dot_general(
        a_ref[...], b_ref[...], (((1,), (1,)), ((), ())),
        preferred_element_type=jnp.float32)                 # (n_tile, m_tile)

    # Online logsumexp over the N (sublane) axis, accumulated across ni tiles.
    m_prev = m_scr[...]
    m_new = jnp.maximum(m_prev, jnp.max(s, axis=0, keepdims=True))
    l_scr[...] = (l_scr[...] * jnp.exp(m_prev - m_new)
                  + jnp.sum(jnp.exp(s - m_new), axis=0, keepdims=True))
    m_scr[...] = m_new

    @pl.when(ni == pl.num_programs(1) - 1)
    def _():
        lse_ref[...] = m_scr[...] + jnp.log(l_scr[...])


# --------------------------------------------------------------------------
# Wrapper
# --------------------------------------------------------------------------
def latent_layer_forward(data, log_sigma, *, M, temperature, key):
    """JAX/Pallas equivalent of LatentLayer.forward.

    data['z']: (N, z_dim) float32;  log_sigma: (1,) float32 parameter.
    Returns (new_data, e) where new_data['z'] = tanh(z) and
    new_data['lse_loss'] has shape (1,) like the torch loss.
    """
    z = jnp.asarray(data["z"], jnp.float32)
    N, z_dim = z.shape
    T = float(temperature)
    kd = z_dim + 2  # augmented contraction dim

    # e ~ Uniform[-1, 1) over (M, z_dim)   (torch.rand(M, z_dim) * 2 - 1)
    e = jax.random.uniform(key, (M, z_dim), dtype=jnp.float32) * 2.0 - 1.0

    # ---- tile plan ---------------------------------------------------------
    # M (lane) axis: largest 128-multiple tile <= 1024 dividing m_pad; prefer
    # >=2 tiles (each >=256 wide) so the 'parallel' mi axis can feed both v7x
    # TensorCores.
    m_pad = _round_up(M, 128)
    candidates = [t for t in range(1024, 0, -128) if m_pad % t == 0]
    multi = [t for t in candidates if m_pad // t >= 2 and t >= 256]
    m_tile = multi[0] if multi else candidates[0]

    # N (reduction) axis: one big tile when it fits, else 512-row tiles.
    if N <= 1024:
        n_pad = _round_up(N, 8)
        n_tile = n_pad
    else:
        n_pad = _round_up(N, 512)
        n_tile = 512

    z_p = z if n_pad == N else jnp.pad(z, ((0, n_pad - N), (0, 0)))
    e_p = e if m_pad == M else jnp.pad(e, ((0, m_pad - M), (0, 0)))

    # ---- kernel 1: tanh + per-row squared norm ----
    mean_p, a2_p = pl.pallas_call(
        _tanh_kernel,
        out_shape=(jax.ShapeDtypeStruct((n_pad, z_dim), jnp.float32),
                   jax.ShapeDtypeStruct((n_pad, 1), jnp.float32)),
        grid_spec=pltpu.PrefetchScalarGridSpec(
            num_scalar_prefetch=0,
            grid=(n_pad // n_tile,),
            in_specs=[pl.BlockSpec((n_tile, z_dim), lambda i: (i, 0))],
            out_specs=[pl.BlockSpec((n_tile, z_dim), lambda i: (i, 0)),
                       pl.BlockSpec((n_tile, 1), lambda i: (i, 0))],
        ),
        compiler_params=pltpu.CompilerParams(
            dimension_semantics=("parallel",)),
    )(z_p)

    # ---- build the augmented operands (O(N*kd)/O(M*kd) plain-JAX glue) ----
    ls = log_sigma.astype(jnp.float32)[0]
    alpha_over_T = (-0.5 / T) * jnp.exp(-2.0 * ls)          # alpha / T  (< 0)

    a2_masked = a2_p
    if n_pad != N:
        # Padded rows get a huge "distance" -> exponent ~ -inf -> exp == 0.
        a2_masked = a2_masked.at[N:].set(_MASK_DIST)

    a_aug = jnp.concatenate(
        [mean_p, a2_masked, jnp.ones((n_pad, 1), jnp.float32)], axis=1)
    a_aug = a_aug * alpha_over_T                             # (n_pad, kd)

    e2_p = jnp.sum(e_p * e_p, axis=1, keepdims=True)
    b_aug = jnp.concatenate(
        [-2.0 * e_p, jnp.ones((m_pad, 1), jnp.float32), e2_p], axis=1)  # (m_pad, kd)

    # ---- kernel 2: tiled online logsumexp ----
    lse_cols = pl.pallas_call(
        _lse_kernel,
        out_shape=jax.ShapeDtypeStruct((1, m_pad), jnp.float32),
        grid_spec=pltpu.PrefetchScalarGridSpec(
            num_scalar_prefetch=0,
            grid=(m_pad // m_tile, n_pad // n_tile),
            in_specs=[
                pl.BlockSpec((n_tile, kd), lambda mi, ni: (ni, 0)),  # A_aug
                pl.BlockSpec((m_tile, kd), lambda mi, ni: (mi, 0)),  # B_aug
            ],
            out_specs=pl.BlockSpec((1, m_tile), lambda mi, ni: (0, mi)),
            scratch_shapes=[
                pltpu.VMEM((1, m_tile), jnp.float32),   # running max
                pltpu.VMEM((1, m_tile), jnp.float32),   # running sum
            ],
        ),
        compiler_params=pltpu.CompilerParams(
            dimension_semantics=("parallel", "arbitrary"),
            vmem_limit_bytes=48 * 1024 * 1024,
        ),
        cost_estimate=pl.CostEstimate(
            flops=2 * n_pad * m_pad * kd,
            transcendentals=n_pad * m_pad,
            bytes_accessed=4 * (n_pad * kd * (m_pad // m_tile)
                                + m_pad * kd + m_pad),
        ),
    )(a_aug, b_aug)

    # ---- scalar epilogue (O(M) glue, stays in plain JAX) ----
    # loss = -mean_j(T * lse_j) + 0.5*z_dim*(2*log_sigma - log(e)) + log(N)
    loss = (-T * jnp.mean(lse_cols[0, :M])
            + 0.5 * float(z_dim) * (2.0 * log_sigma.astype(jnp.float32) - 1.0)
            + math.log(float(N)))                            # shape (1,)

    out = dict(data)
    out["z"] = mean_p[:N, :]
    out["lse_loss"] = loss
    return out, e  # also return e so the reference check can reuse it


# --------------------------------------------------------------------------
# Pure-JAX reference for correctness checking
# --------------------------------------------------------------------------
def _reference(z, e, log_sigma, T):
    mean = jnp.tanh(z)
    N, z_dim = mean.shape
    diff = mean[:, None, :] - e[None, :, :]
    distance = jnp.sum(diff * diff, axis=2)                    # (N, M)
    sigma = jnp.exp(log_sigma[0])
    alpha = -1.0 / (2.0 * sigma ** 2)
    lse = jax.scipy.special.logsumexp(alpha * distance / T, axis=0)
    loss = -jnp.mean(T * lse)
    loss = loss + 0.5 * z_dim * (2 * log_sigma[0] - np.log(np.e)) + np.log(N)
    return mean, loss


if __name__ == "__main__":
    key = jax.random.PRNGKey(0)
    k_z, k_e = jax.random.split(key)

    N, z_dim, M = 8, 32, 16
    temperature = 0.5
    init_log_sigma = -1.0

    z = jax.random.normal(k_z, (N, z_dim), dtype=jnp.float32)
    log_sigma = jnp.ones((1,), jnp.float32) * init_log_sigma
    data = {"z": z}

    out, e = latent_layer_forward(
        data, log_sigma, M=M, temperature=temperature, key=k_e
    )
    jax.block_until_ready((out["z"], out["lse_loss"]))

    ref_z, ref_loss = _reference(z, e, log_sigma, temperature)
    assert jnp.allclose(out["z"], ref_z, atol=1e-5, rtol=1e-5)
    assert jnp.allclose(out["lse_loss"][0], ref_loss, atol=1e-4, rtol=1e-4)

    print("KERNEL_OK")
</pallas_src>

<mosaic_0001>
module attributes {stable_mosaic.version = 11 : i64} {
  func.func @_tanh_kernel(%arg0: i32, %arg1: memref<8x32xf32, #tpu.memory_space<vmem>>, %arg2: memref<8x32xf32, #tpu.memory_space<vmem>>, %arg3: memref<8x1xf32, #tpu.memory_space<vmem>>) attributes {dimension_semantics = [#tpu.dimension_semantics<parallel>], iteration_bounds = array<i64: 1>, scalar_prefetch = 0 : i64, scratch_operands = 0 : i64, tpu.core_type = #tpu.core_type<tc>, window_params = [{transform_indices = @transform_0, window_bounds = array<i64: 8, 32>}, {transform_indices = @transform_1, window_bounds = array<i64: 8, 32>}, {transform_indices = @transform_2, window_bounds = array<i64: 8, 1>}]} {
    %c0 = arith.constant 0 : index
    %c0_0 = arith.constant 0 : index
    %0 = vector.load %arg1[%c0, %c0_0] : memref<8x32xf32, #tpu.memory_space<vmem>>, vector<8x32xf32>
    %1 = math.tanh %0 : vector<8x32xf32>
    %c0_1 = arith.constant 0 : index
    %c0_2 = arith.constant 0 : index
    %2 = vector.load %arg2[%c0_1, %c0_2] : memref<8x32xf32, #tpu.memory_space<vmem>>, vector<8x32xf32>
    tpu.vector_store %arg2[%c0_1, %c0_2], %1 {strides = array<i32>} : memref<8x32xf32, #tpu.memory_space<vmem>>, vector<8x32xf32>,
    %3 = arith.mulf %1, %1 : vector<8x32xf32>
    %cst = arith.constant dense<0.000000e+00> : vector<8xf32>
    %4 = vector.multi_reduction <add>, %3, %cst [1] : vector<8x32xf32> to vector<8xf32>
    %5 = vector.shape_cast %4 : vector<8xf32> to vector<8x1xf32>
    %c0_3 = arith.constant 0 : index
    %c0_4 = arith.constant 0 : index
    %6 = vector.load %arg3[%c0_3, %c0_4] : memref<8x1xf32, #tpu.memory_space<vmem>>, vector<8x1xf32>
    tpu.vector_store %arg3[%c0_3, %c0_4], %5 {strides = array<i32>} : memref<8x1xf32, #tpu.memory_space<vmem>>, vector<8x1xf32>,
    return
  }
  func.func @transform_0(%arg0: i32) -> (i32, i32) {
    %c0_i32 = arith.constant 0 : i32
    %c0_i32_0 = arith.constant 0 : i32
    return %arg0, %c0_i32 : i32, i32
  }
  func.func @transform_1(%arg0: i32) -> (i32, i32) {
    %c0_i32 = arith.constant 0 : i32
    %c0_i32_0 = arith.constant 0 : i32
    return %arg0, %c0_i32 : i32, i32
  }
  func.func @transform_2(%arg0: i32) -> (i32, i32) {
    %c0_i32 = arith.constant 0 : i32
    %c0_i32_0 = arith.constant 0 : i32
    return %arg0, %c0_i32 : i32, i32
  }
}

</mosaic_0001>

<llo_original>
// kernel: tpu_custom_call.1
$region0: #{tpu_custom_call.1}
  #allocation0 [shape = 'u32[]', space=smem, size = 0x4, offset = 0x4, fixed_abs, tag = 'smem constant byte address 0x4 - core index']
  #allocation1 [shape = 'u32[144,128]{1,0:T(1,128)}', space=vmem, size = 0x12000, scoped, tag = 'internal scratch']
  %s0 = inlined_call_operand.hbm [shape: f32[8,32], index: 0, kind: input, shape index: {}]
  %s1 = inlined_call_operand.hbm [shape: f32[8,32], index: 1, kind: output, shape index: {0}]
  %s2 = inlined_call_operand.vmem [shape: f32[8,1], index: 2, kind: output, shape index: {1}]
  %3 = xla_tuple %s1, %s2
  %s4 = sld [smem:[#allocation0]]
  $region26: #{tpu_custom_call.1} parent=0
    _
  %s6 = ssub.s32 1, %s4
  %s7 = scalar_select 0, %s6, %s4
  $region1: #{tpu_custom_call.1} parent=0
    #allocation2 [shape = 'u8[4096]{0}', space=vmem, size = 0x1000, scoped, tag = 'input window, operand 0, single buffered']
    #allocation3 [shape = 's32[1]{0}', space=sflag, size = 0x4, scoped, tag = 'scoped memory for tpu_custom_call.1']
    #allocation4 [shape = 's32[1]{0}', space=sflag, size = 0x4, scoped, tag = 'scoped memory for tpu_custom_call.1']
    #allocation5 [shape = 'u8[4096]{0}', space=vmem, size = 0x1000, scoped, tag = 'output window, operand 0, single buffered']
    %8 = vsyncpa [#allocation3], 0
    %9 = vsyncpa [#allocation4], 0
    // Predicated region
    $region2: #{tpu_custom_call.1} parent=1 // pred_check
      _
    $region3: #{tpu_custom_call.1} parent=1 // pred_check_branch
      %11 = sbr.rel (0) target = $region5
    $region4: #{tpu_custom_call.1} parent=1 // pred_region
      %s13 = ssub.s32 128, 128
      %14 = vsyncadd [#allocation3], %s13
      %s16 = sshll.u32 [#allocation2], 4
      %s17 = int_to_ptr.vmem [resolvable:$true] %s16
      %19 = dma.hbm_to_vmem [thread:$0]  %s0, 128, %s17, [#allocation3]
    $region5: #{tpu_custom_call.1} parent=1 // pred_fallthru
      _
    // Predicated region
    $region6: #{tpu_custom_call.1} parent=1 // pred_check
      _
    $region7: #{tpu_custom_call.1} parent=1 // pred_check_branch
      %21 = sbr.rel (0) target = $region9
    $region8: #{tpu_custom_call.1} parent=1 // pred_region
      %22 = dma.done [#allocation3], 128
    $region9: #{tpu_custom_call.1} parent=1 // pred_fallthru
      _
    %v23 = vld [vmem:[#allocation2] sm:$0xff]
    %v24 = vtanh.pop %v23
    %vm25 = vcmask 261120
    %26 = vst.msk [vmem:[#allocation5] sm:$0xff] %vm25, %v24
    %v27 = vmul.f32 %v24, %v24
    %v28 = vsel %vm25, %v27, 0.0
    %29 = vadd.xlane.f32.xlu0 %v28
    %v30 = vpop.xlane.xlu0 %29
    %vm31 = vcmask 7168
    %32 = vst.msk [vmem:[%s2] sm:$0xff] %vm31, %v30
    // Predicated region
    $region10: #{tpu_custom_call.1} parent=1 // pred_check
      _
    $region11: #{tpu_custom_call.1} parent=1 // pred_check_branch
      %34 = sbr.rel (0) target = $region13
    $region12: #{tpu_custom_call.1} parent=1 // pred_region
      %s36 = ssub.s32 128, 128
      %37 = vsyncadd [#allocation4], %s36
      %s39 = sshll.u32 [#allocation5], 4
      %s40 = int_to_ptr.vmem [resolvable:$true] %s39
      %42 = dma.vmem_to_hbm [thread:$0]  %s40, 128, %s1, [#allocation4]
    $region13: #{tpu_custom_call.1} parent=1 // pred_fallthru
      _
    // Predicated region
    $region14: #{tpu_custom_call.1} parent=1 // pred_check
      _
    $region15: #{tpu_custom_call.1} parent=1 // pred_check_branch
      %44 = sbr.rel (0) target = $region17
    $region16: #{tpu_custom_call.1} parent=1 // pred_region
      _
    $region17: #{tpu_custom_call.1} parent=1 // pred_fallthru
      _
    // Predicated region
    $region18: #{tpu_custom_call.1} parent=1 // pred_check
      _
    $region19: #{tpu_custom_call.1} parent=1 // pred_check_branch
      %46 = sbr.rel (0) target = $region21
    $region20: #{tpu_custom_call.1} parent=1 // pred_region
      %47 = dma.done [#allocation4], 128
    $region21: #{tpu_custom_call.1} parent=1 // pred_fallthru
      _
    // Predicated region
    $region22: #{tpu_custom_call.1} parent=1 // pred_check
      _
    $region23: #{tpu_custom_call.1} parent=1 // pred_check_branch
      %49 = sbr.rel (0) target = $region25
    $region24: #{tpu_custom_call.1} parent=1 // pred_region
      _
    $region25: #{tpu_custom_call.1} parent=1 // pred_fallthru
      _
    %50 = vsyncpa [#allocation3], 1
    %51 = vsyncpa [#allocation4], 1

</llo_original>
